<compile_context>
chip_gen: v6e
topology: v6e:2x2x1
jax: 0.10.0
libtpu: 0.0.40
codegen_flags: <defaults>
</compile_context>

<pallas_src>
import jax
import jax.numpy as jnp
from jax.experimental import pallas as pl
from jax.experimental.pallas import tpu as pltpu


def _two_layer_kernel(x_ref, w1_ref, b1_ref, w2_ref, b2_ref, o_ref):
    # x: (TN, Dp) bf16, w1: (Dp, Hp) bf16, b1: (1, Hp) f32,
    # w2: (Hp, Cp) bf16, b2: (1, Cp) f32, o: (TN, Cp) f32.

    # Linear 1 (MXU, f32 accumulate).
    h = jnp.dot(x_ref[...], w1_ref[...],
                preferred_element_type=jnp.float32) + b1_ref[...]

    # Sigmoid via tanh: a single EUP push per element (exp + reciprocal is
    # two), and no overflow-to-inf for very negative h.
    s = 0.5 * (1.0 + jnp.tanh(0.5 * h))

    # Linear 2 (MXU, bf16 inputs, f32 accumulate).
    logits = jnp.dot(s.astype(w2_ref.dtype), w2_ref[...],
                     preferred_element_type=jnp.float32) + b2_ref[...]

    # Numerically stable softmax over classes.  Padded classes carry a -1e9
    # bias so exp(logit - max) underflows to exactly 0.  The normalization
    # reciprocal is exact (only a (TN, 1) vector) so rows sum to 1.
    m = jnp.max(logits, axis=-1, keepdims=True)
    e = jnp.exp(logits - m)
    denom = jnp.sum(e, axis=-1, keepdims=True)
    o_ref[...] = e * (1.0 / denom)


def _round_up(x, m):
    return ((x + m - 1) // m) * m


def _vmem_budget_bytes():
    """~75% of physical VMEM: ~96 MiB on v5e/v6e, ~48 MiB on v7x."""
    try:
        cap = int(pltpu.get_tpu_info().vmem_capacity_bytes)
    except Exception:
        cap = 64 << 20          # conservative fallback (v7x per-core VMEM)
    return (cap * 3) // 4


def _pick_tn(N, Dp, Cp, resident_bytes, vmem_budget):
    """Batch tile: as large as VMEM allows; keep >=2 grid steps when possible."""
    if N < 128:
        # bf16 native tile is (16, 128): round to 16 sublane-packed rows.
        return _round_up(max(N, 1), 16)
    per_row = 2 * (Dp * 2) + 2 * (Cp * 4)   # dbl-buffered bf16 x + f32 out
    tn = 128
    for cand in (512, 384, 256):
        if resident_bytes + cand * per_row + (4 << 20) <= vmem_budget:
            tn = cand
            break
    # Keep >=2 grid steps when the batch allows it so that, with
    # dimension_semantics=("parallel",), both v7x TensorCores are used.
    while tn > 128 and (N + tn - 1) // tn < 2:
        tn -= 128
    return tn


def prepare_params(w1, b1, w2, b2):
    """Pad/cast the parameters ONCE (hoisted out of the per-call path).

    w1: (D, H), b1: (H,), w2: (H, C), b2: (C,).  Feature dims are padded to
    multiples of 128 (lanes); padded classes get a -1e9 bias so they vanish
    under the stable softmax; padded hidden units hit zero rows of w2.
    """
    D, H = w1.shape
    C = w2.shape[1]
    Dp, Hp, Cp = _round_up(D, 128), _round_up(H, 128), _round_up(C, 128)
    w1p = jnp.zeros((Dp, Hp), jnp.bfloat16).at[:D, :H].set(w1.astype(jnp.bfloat16))
    b1p = jnp.zeros((1, Hp), jnp.float32).at[0, :H].set(b1.astype(jnp.float32))
    w2p = jnp.zeros((Hp, Cp), jnp.bfloat16).at[:H, :C].set(w2.astype(jnp.bfloat16))
    b2p = jnp.full((1, Cp), -1e9, jnp.float32).at[0, :C].set(b2.astype(jnp.float32))
    return {"w1": w1p, "b1": b1p, "w2": w2p, "b2": b2p, "dims": (D, H, C)}


def two_layer_net(x, params):
    """x: (N, ...) arbitrary trailing dims; returns softmax probs (N, num_classes)."""
    D, H, C = params["dims"]
    w1p, b1p, w2p, b2p = params["w1"], params["b1"], params["w2"], params["b2"]
    Dp, Hp = w1p.shape
    Cp = w2p.shape[1]

    N = x.shape[0]
    x2d = x.reshape(N, -1)
    assert x2d.shape[1] == D, "flattened input dim must match w1's input dim"

    vmem_budget = _vmem_budget_bytes()
    # Conservative: assume the compiler may still double-buffer the
    # grid-invariant weight inputs (the Buffered(1) request may fall back).
    resident_bytes = 2 * (Dp * Hp * 2 + Hp * 4 + Hp * Cp * 2 + Cp * 4)
    TN = _pick_tn(N, Dp, Cp, resident_bytes, vmem_budget)

    if N < 128:
        Np = TN                 # one exact tile; padding a tiny batch is free
    else:
        Np = N                  # no batch padding: Pallas masks the ragged tail
    grid = (pl.cdiv(Np, TN),)

    # Activation prep: cast to bf16; pad only when actually needed (avoids an
    # extra full HBM round-trip of x when it is already lane-dense).
    xb = x2d.astype(jnp.bfloat16)
    pad_n, pad_d = Np - N, Dp - D
    if pad_n or pad_d:
        xb = jnp.pad(xb, ((0, pad_n), (0, pad_d)))

    per_tile = 2 * TN * Dp * 2 + 2 * TN * Cp * 4
    vmem_limit = int(min(max(resident_bytes + per_tile + (8 << 20), 32 << 20),
                         vmem_budget))

    def run(weight_pipeline):
        wkw = {} if weight_pipeline is None else {"pipeline_mode": weight_pipeline}
        return pl.pallas_call(
            _two_layer_kernel,
            out_shape=jax.ShapeDtypeStruct((Np, Cp), jnp.float32),
            grid=grid,
            in_specs=[
                pl.BlockSpec((TN, Dp), lambda i: (i, 0)),          # x: batch-tiled
                pl.BlockSpec((Dp, Hp), lambda i: (0, 0), **wkw),   # w1: resident
                pl.BlockSpec((1, Hp), lambda i: (0, 0), **wkw),    # b1: resident
                pl.BlockSpec((Hp, Cp), lambda i: (0, 0), **wkw),   # w2: resident
                pl.BlockSpec((1, Cp), lambda i: (0, 0), **wkw),    # b2: resident
            ],
            out_specs=pl.BlockSpec((TN, Cp), lambda i: (i, 0)),
            compiler_params=pltpu.CompilerParams(
                dimension_semantics=("parallel",),
                vmem_limit_bytes=vmem_limit),
        )(xb, w1p, b1p, w2p, b2p)

    try:
        # Grid-invariant weights/biases: request single buffering to halve
        # their VMEM footprint (matters most on v7x's 64 MiB VMEM).
        out = run(pl.Buffered(1))
    except Exception:
        out = run(None)         # fall back to default pipelining
    # TODO(synk): optionally pl.Buffered(3) on the x spec / bf16 output if
    # profiling still shows exposed DMA after enlarging TN.

    # Strip batch / class padding.
    return out[:N, :C]


def init_params(key, input_dim, hidden_size, num_classes):
    """Deterministic init mirroring nn.Linear shapes (weights kept as (in, out))."""
    k1, k2, k3, k4 = jax.random.split(key, 4)
    lim1 = 1.0 / jnp.sqrt(input_dim)
    lim2 = 1.0 / jnp.sqrt(hidden_size)
    w1 = jax.random.uniform(k1, (input_dim, hidden_size), jnp.float32, -lim1, lim1)
    b1 = jax.random.uniform(k2, (hidden_size,), jnp.float32, -lim1, lim1)
    w2 = jax.random.uniform(k3, (hidden_size, num_classes), jnp.float32, -lim2, lim2)
    b2 = jax.random.uniform(k4, (num_classes,), jnp.float32, -lim2, lim2)
    return w1, b1, w2, b2


if __name__ == "__main__":
    key = jax.random.PRNGKey(0)
    k_in, k_par = jax.random.split(key)

    # Small shapes implied by the forward: a 4-D input flattened to (N, 64).
    N, C_in, Hs, Ws = 2, 4, 4, 4
    input_dim = C_in * Hs * Ws        # 64
    hidden_size = 32
    num_classes = 16

    x = jax.random.normal(k_in, (N, C_in, Hs, Ws), jnp.float32)
    w1, b1, w2, b2 = init_params(k_par, input_dim, hidden_size, num_classes)

    # Pad / cast parameters once (hoisted out of the per-call path).
    params = prepare_params(w1, b1, w2, b2)

    out = two_layer_net(x, params)
    jax.block_until_ready(out)

    # Sanity check against a pure-JAX f32 reference.  Tolerances are loosened
    # because the kernel uses bf16 matmul inputs.
    x2d = x.reshape(N, -1)
    ref = jax.nn.softmax(jax.nn.sigmoid(x2d @ w1 + b1) @ w2 + b2, axis=1)
    assert out.shape == (N, num_classes)
    assert jnp.allclose(out, ref, atol=1e-2, rtol=5e-2)
    assert jnp.allclose(jnp.sum(out, axis=1), 1.0, atol=1e-3)
    assert bool(jnp.all(jnp.isfinite(out)))

    print("KERNEL_OK")
</pallas_src>

<mosaic_0001>
module attributes {stable_mosaic.version = 11 : i64} {
  func.func @_two_layer_kernel(%arg0: i32, %arg1: memref<16x128xbf16, #tpu.memory_space<vmem>>, %arg2: memref<128x128xbf16, #tpu.memory_space<vmem>>, %arg3: memref<1x128xf32, #tpu.memory_space<vmem>>, %arg4: memref<128x128xbf16, #tpu.memory_space<vmem>>, %arg5: memref<1x128xf32, #tpu.memory_space<vmem>>, %arg6: memref<16x128xf32, #tpu.memory_space<vmem>>) attributes {dimension_semantics = [#tpu.dimension_semantics<parallel>], iteration_bounds = array<i64: 1>, scalar_prefetch = 0 : i64, scratch_operands = 0 : i64, tpu.core_type = #tpu.core_type<tc>, window_params = [{transform_indices = @transform_0, window_bounds = array<i64: 16, 128>}, {pipeline_mode = #tpu.pipeline_mode<synchronous>, transform_indices = @transform_1, window_bounds = array<i64: 128, 128>}, {pipeline_mode = #tpu.pipeline_mode<synchronous>, transform_indices = @transform_2, window_bounds = array<i64: 1, 128>}, {pipeline_mode = #tpu.pipeline_mode<synchronous>, transform_indices = @transform_3, window_bounds = array<i64: 128, 128>}, {pipeline_mode = #tpu.pipeline_mode<synchronous>, transform_indices = @transform_4, window_bounds = array<i64: 1, 128>}, {transform_indices = @transform_5, window_bounds = array<i64: 16, 128>}]} {
    %c0 = arith.constant 0 : index
    %c0_0 = arith.constant 0 : index
    %0 = vector.load %arg1[%c0, %c0_0] : memref<16x128xbf16, #tpu.memory_space<vmem>>, vector<16x128xbf16>
    %c0_1 = arith.constant 0 : index
    %c0_2 = arith.constant 0 : index
    %1 = vector.load %arg2[%c0_1, %c0_2] : memref<128x128xbf16, #tpu.memory_space<vmem>>, vector<128x128xbf16>
    %cst = arith.constant dense<0.000000e+00> : vector<16x128xf32>
    %2 = tpu.matmul %0, %1, %cst {dimension_numbers = #tpu.dot_dimension_numbers<[1], [0], [0], [1], [0, 0, 1, 1], [], []>} : vector<16x128xbf16>, vector<128x128xbf16>, vector<16x128xf32> -> vector<16x128xf32>
    %c0_3 = arith.constant 0 : index
    %c0_4 = arith.constant 0 : index
    %3 = vector.load %arg3[%c0_3, %c0_4] : memref<1x128xf32, #tpu.memory_space<vmem>>, vector<1x128xf32>
    %4 = vector.broadcast %3 : vector<1x128xf32> to vector<16x128xf32>
    %5 = arith.addf %2, %4 : vector<16x128xf32>
    %cst_5 = arith.constant 5.000000e-01 : f32
    %6 = vector.broadcast %cst_5 : f32 to vector<16x128xf32>
    %7 = arith.mulf %6, %5 : vector<16x128xf32>
    %8 = math.tanh %7 : vector<16x128xf32>
    %cst_6 = arith.constant 1.000000e+00 : f32
    %9 = vector.broadcast %cst_6 : f32 to vector<16x128xf32>
    %10 = arith.addf %9, %8 : vector<16x128xf32>
    %cst_7 = arith.constant 5.000000e-01 : f32
    %11 = vector.broadcast %cst_7 : f32 to vector<16x128xf32>
    %12 = arith.mulf %11, %10 : vector<16x128xf32>
    %13 = arith.truncf %12 : vector<16x128xf32> to vector<16x128xbf16>
    %c0_8 = arith.constant 0 : index
    %c0_9 = arith.constant 0 : index
    %14 = vector.load %arg4[%c0_8, %c0_9] : memref<128x128xbf16, #tpu.memory_space<vmem>>, vector<128x128xbf16>
    %cst_10 = arith.constant dense<0.000000e+00> : vector<16x128xf32>
    %15 = tpu.matmul %13, %14, %cst_10 {dimension_numbers = #tpu.dot_dimension_numbers<[1], [0], [0], [1], [0, 0, 1, 1], [], []>} : vector<16x128xbf16>, vector<128x128xbf16>, vector<16x128xf32> -> vector<16x128xf32>
    %c0_11 = arith.constant 0 : index
    %c0_12 = arith.constant 0 : index
    %16 = vector.load %arg5[%c0_11, %c0_12] : memref<1x128xf32, #tpu.memory_space<vmem>>, vector<1x128xf32>
    %17 = vector.broadcast %16 : vector<1x128xf32> to vector<16x128xf32>
    %18 = arith.addf %15, %17 : vector<16x128xf32>
    %cst_13 = arith.constant dense<0xFF800000> : vector<16xf32>
    %19 = vector.multi_reduction <maximumf>, %18, %cst_13 [1] : vector<16x128xf32> to vector<16xf32>
    %20 = vector.shape_cast %19 : vector<16xf32> to vector<16x1xf32>
    %21 = vector.broadcast %20 : vector<16x1xf32> to vector<16x128xf32>
    %22 = arith.subf %18, %21 : vector<16x128xf32>
    %23 = math.exp %22 : vector<16x128xf32>
    %cst_14 = arith.constant dense<0.000000e+00> : vector<16xf32>
    %24 = vector.multi_reduction <add>, %23, %cst_14 [1] : vector<16x128xf32> to vector<16xf32>
    %25 = vector.shape_cast %24 : vector<16xf32> to vector<16x1xf32>
    %cst_15 = arith.constant 1.000000e+00 : f32
    %26 = vector.broadcast %cst_15 : f32 to vector<16x1xf32>
    %27 = arith.divf %26, %25 : vector<16x1xf32>
    %28 = vector.broadcast %27 : vector<16x1xf32> to vector<16x128xf32>
    %29 = arith.mulf %23, %28 : vector<16x128xf32>
    %c0_16 = arith.constant 0 : index
    %c0_17 = arith.constant 0 : index
    %30 = vector.load %arg6[%c0_16, %c0_17] : memref<16x128xf32, #tpu.memory_space<vmem>>, vector<16x128xf32>
    tpu.vector_store %arg6[%c0_16, %c0_17], %29 {strides = array<i32>} : memref<16x128xf32, #tpu.memory_space<vmem>>, vector<16x128xf32>,
    return
  }
  func.func @transform_0(%arg0: i32) -> (i32, i32) {
    %c0_i32 = arith.constant 0 : i32
    %c0_i32_0 = arith.constant 0 : i32
    return %arg0, %c0_i32 : i32, i32
  }
  func.func @transform_1(%arg0: i32) -> (i32, i32) {
    %c0_i32 = arith.constant 0 : i32
    %c0_i32_0 = arith.constant 0 : i32
    %c0_i32_1 = arith.constant 0 : i32
    return %c0_i32, %c0_i32_0 : i32, i32
  }
  func.func @transform_2(%arg0: i32) -> (i32, i32) {
    %c0_i32 = arith.constant 0 : i32
    %c0_i32_0 = arith.constant 0 : i32
    %c0_i32_1 = arith.constant 0 : i32
    return %c0_i32, %c0_i32_0 : i32, i32
  }
  func.func @transform_3(%arg0: i32) -> (i32, i32) {
    %c0_i32 = arith.constant 0 : i32
    %c0_i32_0 = arith.constant 0 : i32
    %c0_i32_1 = arith.constant 0 : i32
    return %c0_i32, %c0_i32_0 : i32, i32
  }
  func.func @transform_4(%arg0: i32) -> (i32, i32) {
    %c0_i32 = arith.constant 0 : i32
    %c0_i32_0 = arith.constant 0 : i32
    %c0_i32_1 = arith.constant 0 : i32
    return %c0_i32, %c0_i32_0 : i32, i32
  }
  func.func @transform_5(%arg0: i32) -> (i32, i32) {
    %c0_i32 = arith.constant 0 : i32
    %c0_i32_0 = arith.constant 0 : i32
    return %arg0, %c0_i32 : i32, i32
  }
}

module attributes {stable_mosaic.version = 11 : i64} {
  func.func @_two_layer_kernel(%arg0: i32, %arg1: memref<16x128xbf16, #tpu.memory_space<vmem>>, %arg2: memref<128x128xbf16, #tpu.memory_space<vmem>>, %arg3: memref<1x128xf32, #tpu.memory_space<vmem>>, %arg4: memref<128x128xbf16, #tpu.memory_space<vmem>>, %arg5: memref<1x128xf32, #tpu.memory_space<vmem>>, %arg6: memref<16x128xf32, #tpu.memory_space<vmem>>) attributes {dimension_semantics = [#tpu.dimension_semantics<parallel>], iteration_bounds = array<i64: 1>, scalar_prefetch = 0 : i64, scratch_operands = 0 : i64, tpu.core_type = #tpu.core_type<tc>, window_params = [{transform_indices = @transform_0, window_bounds = array<i64: 16, 128>}, {pipeline_mode = #tpu.pipeline_mode<synchronous>, transform_indices = @transform_1, window_bounds = array<i64: 128, 128>}, {pipeline_mode = #tpu.pipeline_mode<synchronous>, transform_indices = @transform_2, window_bounds = array<i64: 1, 128>}, {pipeline_mode = #tpu.pipeline_mode<synchronous>, transform_indices = @transform_3, window_bounds = array<i64: 128, 128>}, {pipeline_mode = #tpu.pipeline_mode<synchronous>, transform_indices = @transform_4, window_bounds = array<i64: 1, 128>}, {transform_indices = @transform_5, window_bounds = array<i64: 16, 128>}]} {
    %c0 = arith.constant 0 : index
    %c0_0 = arith.constant 0 : index
    %0 = vector.load %arg1[%c0, %c0_0] : memref<16x128xbf16, #tpu.memory_space<vmem>>, vector<16x128xbf16>
    %c0_1 = arith.constant 0 : index
    %c0_2 = arith.constant 0 : index
    %1 = vector.load %arg2[%c0_1, %c0_2] : memref<128x128xbf16, #tpu.memory_space<vmem>>, vector<128x128xbf16>
    %cst = arith.constant dense<0.000000e+00> : vector<16x128xf32>
    %2 = tpu.matmul %0, %1, %cst {dimension_numbers = #tpu.dot_dimension_numbers<[1], [0], [0], [1], [0, 0, 1, 1], [], []>} : vector<16x128xbf16>, vector<128x128xbf16>, vector<16x128xf32> -> vector<16x128xf32>
    %c0_3 = arith.constant 0 : index
    %c0_4 = arith.constant 0 : index
    %3 = vector.load %arg3[%c0_3, %c0_4] : memref<1x128xf32, #tpu.memory_space<vmem>>, vector<1x128xf32>
    %4 = vector.broadcast %3 : vector<1x128xf32> to vector<16x128xf32>
    %5 = arith.addf %2, %4 : vector<16x128xf32>
    %cst_5 = arith.constant 5.000000e-01 : f32
    %6 = vector.broadcast %cst_5 : f32 to vector<16x128xf32>
    %7 = arith.mulf %6, %5 : vector<16x128xf32>
    %8 = math.tanh %7 : vector<16x128xf32>
    %cst_6 = arith.constant 1.000000e+00 : f32
    %9 = vector.broadcast %cst_6 : f32 to vector<16x128xf32>
    %10 = arith.addf %9, %8 : vector<16x128xf32>
    %cst_7 = arith.constant 5.000000e-01 : f32
    %11 = vector.broadcast %cst_7 : f32 to vector<16x128xf32>
    %12 = arith.mulf %11, %10 : vector<16x128xf32>
    %13 = arith.truncf %12 : vector<16x128xf32> to vector<16x128xbf16>
    %c0_8 = arith.constant 0 : index
    %c0_9 = arith.constant 0 : index
    %14 = vector.load %arg4[%c0_8, %c0_9] : memref<128x128xbf16, #tpu.memory_space<vmem>>, vector<128x128xbf16>
    %cst_10 = arith.constant dense<0.000000e+00> : vector<16x128xf32>
    %15 = tpu.matmul %13, %14, %cst_10 {dimension_numbers = #tpu.dot_dimension_numbers<[1], [0], [0], [1], [0, 0, 1, 1], [], []>} : vector<16x128xbf16>, vector<128x128xbf16>, vector<16x128xf32> -> vector<16x128xf32>
    %c0_11 = arith.constant 0 : index
    %c0_12 = arith.constant 0 : index
    %16 = vector.load %arg5[%c0_11, %c0_12] : memref<1x128xf32, #tpu.memory_space<vmem>>, vector<1x128xf32>
    %17 = vector.broadcast %16 : vector<1x128xf32> to vector<16x128xf32>
    %18 = arith.addf %15, %17 : vector<16x128xf32>
    %cst_13 = arith.constant dense<0xFF800000> : vector<16xf32>
    %19 = vector.multi_reduction <maximumf>, %18, %cst_13 [1] : vector<16x128xf32> to vector<16xf32>
    %20 = vector.shape_cast %19 : vector<16xf32> to vector<16x1xf32>
    %21 = vector.broadcast %20 : vector<16x1xf32> to vector<16x128xf32>
    %22 = arith.subf %18, %21 : vector<16x128xf32>
    %23 = math.exp %22 : vector<16x128xf32>
    %cst_14 = arith.constant dense<0.000000e+00> : vector<16xf32>
    %24 = vector.multi_reduction <add>, %23, %cst_14 [1] : vector<16x128xf32> to vector<16xf32>
    %25 = vector.shape_cast %24 : vector<16xf32> to vector<16x1xf32>
    %cst_15 = arith.constant 1.000000e+00 : f32
    %26 = vector.broadcast %cst_15 : f32 to vector<16x1xf32>
    %27 = arith.divf %26, %25 : vector<16x1xf32>
    %28 = vector.broadcast %27 : vector<16x1xf32> to vector<16x128xf32>
    %29 = arith.mulf %23, %28 : vector<16x128xf32>
    %c0_16 = arith.constant 0 : index
    %c0_17 = arith.constant 0 : index
    %30 = vector.load %arg6[%c0_16, %c0_17] : memref<16x128xf32, #tpu.memory_space<vmem>>, vector<16x128xf32>
    tpu.vector_store %arg6[%c0_16, %c0_17], %29 {strides = array<i32>} : memref<16x128xf32, #tpu.memory_space<vmem>>, vector<16x128xf32>,
    return
  }
  func.func @transform_0(%arg0: i32) -> (i32, i32) {
    %c0_i32 = arith.constant 0 : i32
    %c0_i32_0 = arith.constant 0 : i32
    return %arg0, %c0_i32 : i32, i32
  }
  func.func @transform_1(%arg0: i32) -> (i32, i32) {
    %c0_i32 = arith.constant 0 : i32
    %c0_i32_0 = arith.constant 0 : i32
    %c0_i32_1 = arith.constant 0 : i32
    return %c0_i32, %c0_i32_0 : i32, i32
  }
  func.func @transform_2(%arg0: i32) -> (i32, i32) {
    %c0_i32 = arith.constant 0 : i32
    %c0_i32_0 = arith.constant 0 : i32
    %c0_i32_1 = arith.constant 0 : i32
    return %c0_i32, %c0_i32_0 : i32, i32
  }
  func.func @transform_3(%arg0: i32) -> (i32, i32) {
    %c0_i32 = arith.constant 0 : i32
    %c0_i32_0 = arith.constant 0 : i32
    %c0_i32_1 = arith.constant 0 : i32
    return %c0_i32, %c0_i32_0 : i32, i32
  }
  func.func @transform_4(%arg0: i32) -> (i32, i32) {
    %c0_i32 = arith.constant 0 : i32
    %c0_i32_0 = arith.constant 0 : i32
    %c0_i32_1 = arith.constant 0 : i32
    return %c0_i32, %c0_i32_0 : i32, i32
  }
  func.func @transform_5(%arg0: i32) -> (i32, i32) {
    %c0_i32 = arith.constant 0 : i32
    %c0_i32_0 = arith.constant 0 : i32
    return %arg0, %c0_i32 : i32, i32
  }
}

</mosaic_0001>

<llo_original>
// kernel: tpu_custom_call.1
$region0: #{tpu_custom_call.1}
  #allocation0 [shape = 'u32[]', space=smem, size = 0x4, offset = 0x4, fixed_abs, tag = 'smem constant byte address 0x4 - core index']
  #allocation1 [shape = 'u32[144,128]{1,0:T(1,128)}', space=vmem, size = 0x12000, scoped, tag = 'internal scratch']
  %s0 = inlined_call_operand.hbm [shape: bf16[16,128], index: 0, kind: input, shape index: {}]
  %s1 = inlined_call_operand.hbm [shape: bf16[128,128], index: 1, kind: input, shape index: {}]
  %s2 = inlined_call_operand.vmem [shape: f32[1,128], index: 2, kind: input, shape index: {}]
  %s3 = inlined_call_operand.hbm [shape: bf16[128,128], index: 3, kind: input, shape index: {}]
  %s4 = inlined_call_operand.vmem [shape: f32[1,128], index: 4, kind: input, shape index: {}]
  %s5 = inlined_call_operand.hbm [shape: f32[16,128], index: 5, kind: output, shape index: {}]
  %s6 = sld [smem:[#allocation0]]
  $region42: #{tpu_custom_call.1} parent=0
    _
  %s8 = ssub.s32 1, %s6
  %s9 = scalar_select 0, %s8, %s6
  $region1: #{tpu_custom_call.1} parent=0
    #allocation2 [shape = 'u8[4096]{0}', space=vmem, size = 0x1000, scoped, tag = 'input window, operand 0, single buffered']
    #allocation3 [shape = 's32[1]{0}', space=sflag, size = 0x4, scoped, tag = 'scoped memory for tpu_custom_call.1']
    #allocation4 [shape = 's32[1]{0}', space=sflag, size = 0x4, scoped, tag = 'scoped memory for tpu_custom_call.1']
    #allocation5 [shape = 'u8[32768]{0}', space=vmem, size = 0x8000, scoped, tag = 'input window, operand 1, single buffered']
    #allocation6 [shape = 's32[1]{0}', space=sflag, size = 0x4, scoped, tag = 'scoped memory for tpu_custom_call.1']
    #allocation7 [shape = 'u8[32768]{0}', space=vmem, size = 0x8000, scoped, tag = 'input window, operand 3, single buffered']
    #allocation8 [shape = 'u8[8192]{0}', space=vmem, size = 0x2000, scoped, tag = 'output window, operand 0, single buffered']
    %10 = vsyncpa [#allocation3], 0
    %11 = vsyncpa [#allocation6], 0
    %12 = vsyncpa [#allocation4], 0
    // Predicated region
    $region2: #{tpu_custom_call.1} parent=1 // pred_check
      _
    $region3: #{tpu_custom_call.1} parent=1 // pred_check_branch
      %14 = sbr.rel (0) target = $region5
    $region4: #{tpu_custom_call.1} parent=1 // pred_region
      %s16 = ssub.s32 128, 128
      %17 = vsyncadd [#allocation3], %s16
      %s18 = sshll.u32 [#allocation2], 4
      %s19 = int_to_ptr.vmem [resolvable:$true] %s18
      %24 = dma.hbm_to_vmem [thread:$0]  %s0, 128, %s19, [#allocation3], 64, 64, 4
    $region5: #{tpu_custom_call.1} parent=1 // pred_fallthru
      _
    // Predicated region
    $region6: #{tpu_custom_call.1} parent=1 // pred_check
      _
    $region7: #{tpu_custom_call.1} parent=1 // pred_check_branch
      %26 = sbr.rel (0) target = $region9
    $region8: #{tpu_custom_call.1} parent=1 // pred_region
      %s28 = ssub.s32 1024, 1024
      %29 = vsyncadd [#allocation6], %s28
      %s30 = sshll.u32 [#allocation5], 4
      %s31 = int_to_ptr.vmem [resolvable:$true] %s30
      %36 = dma.hbm_to_vmem [thread:$0]  %s1, 1024, %s31, [#allocation6], 64, 64, 4
    $region9: #{tpu_custom_call.1} parent=1 // pred_fallthru
      _
    // Predicated region
    $region10: #{tpu_custom_call.1} parent=1 // pred_check
      _
    $region11: #{tpu_custom_call.1} parent=1 // pred_check_branch
      %38 = sbr.rel (0) target = $region13
    $region12: #{tpu_custom_call.1} parent=1 // pred_region
      _
    $region13: #{tpu_custom_call.1} parent=1 // pred_fallthru
      _
    // Predicated region
    $region14: #{tpu_custom_call.1} parent=1 // pred_check
      _
    $region15: #{tpu_custom_call.1} parent=1 // pred_check_branch
      %40 = sbr.rel (0) target = $region17
    $region16: #{tpu_custom_call.1} parent=1 // pred_region
      %s42 = ssub.s32 1024, 1024
      %43 = vsyncadd [#allocation6], %s42
      %s44 = sshll.u32 [#allocation7], 4
      %s45 = int_to_ptr.vmem [resolvable:$true] %s44
      %50 = dma.hbm_to_vmem [thread:$0]  %s3, 1024, %s45, [#allocation6], 64, 64, 4
    $region17: #{tpu_custom_call.1} parent=1 // pred_fallthru
      _
    // Predicated region
    $region18: #{tpu_custom_call.1} parent=1 // pred_check
      _
    $region19: #{tpu_custom_call.1} parent=1 // pred_check_branch
      %52 = sbr.rel (0) target = $region21
    $region20: #{tpu_custom_call.1} parent=1 // pred_region
      _
    $region21: #{tpu_custom_call.1} parent=1 // pred_fallthru
      _
    // Predicated region
    $region22: #{tpu_custom_call.1} parent=1 // pred_check
      _
    $region23: #{tpu_custom_call.1} parent=1 // pred_check_branch
      %54 = sbr.rel (0) target = $region25
    $region24: #{tpu_custom_call.1} parent=1 // pred_region
      %55 = dma.done [#allocation3], 128
    $region25: #{tpu_custom_call.1} parent=1 // pred_fallthru
      _
    // Predicated region
    $region26: #{tpu_custom_call.1} parent=1 // pred_check
      _
    $region27: #{tpu_custom_call.1} parent=1 // pred_check_branch
      %57 = sbr.rel (0) target = $region29
    $region28: #{tpu_custom_call.1} parent=1 // pred_region
      %58 = dma.done [#allocation6], 1024
    $region29: #{tpu_custom_call.1} parent=1 // pred_fallthru
      _
    // Predicated region
    $region30: #{tpu_custom_call.1} parent=1 // pred_check
      _
    $region31: #{tpu_custom_call.1} parent=1 // pred_check_branch
      %60 = sbr.rel (0) target = $region33
    $region32: #{tpu_custom_call.1} parent=1 // pred_region
      %61 = dma.done [#allocation6], 1024
    $region33: #{tpu_custom_call.1} parent=1 // pred_fallthru
      _
    %v63 = vld [vmem:[#allocation2] sm:$0xf]
    %v64 = vld [vmem:[#allocation2 + $0x4] sm:$0xf]
    %v65 = vld [vmem:[#allocation5] sm:$0xf]
    %v66 = vld [vmem:[#allocation5 + $0x4] sm:$0xf]
    %v67 = vld [vmem:[#allocation5 + $0x8] sm:$0xf]
    %v68 = vld [vmem:[#allocation5 + $0xc] sm:$0xf]
    %v69 = vld [vmem:[#allocation5 + $0x10] sm:$0xf]
    %v70 = vld [vmem:[#allocation5 + $0x14] sm:$0xf]
    %v71 = vld [vmem:[#allocation5 + $0x18] sm:$0xf]
    %v72 = vld [vmem:[#allocation5 + $0x1c] sm:$0xf]
    %v73 = vld [vmem:[#allocation5 + $0x20] sm:$0xf]
    %v74 = vld [vmem:[#allocation5 + $0x24] sm:$0xf]
    %v75 = vld [vmem:[#allocation5 + $0x28] sm:$0xf]
    %v76 = vld [vmem:[#allocation5 + $0x2c] sm:$0xf]
    %v77 = vld [vmem:[#allocation5 + $0x30] sm:$0xf]
    %v78 = vld [vmem:[#allocation5 + $0x34] sm:$0xf]
    %v79 = vld [vmem:[#allocation5 + $0x38] sm:$0xf]
    %v80 = vld [vmem:[#allocation5 + $0x3c] sm:$0xf]
    %v81 = vld [vmem:[%s2] sm:$0x1]
    %v83 = vlaneseq
    %v84 = vshrl.u32 %v83, 7
    %v85 = vsub.s32 0, %v84
    %v86 = vrot.slane %v81, %v85
    %v90 = vunpack.c.l.b16 %v63
    %v91 = vunpack.c.l.b16 %v64
    %v92 = vpack.c.b16 %v91, %v90
    %v110 = vunpack.c.l.b16 %v65
    %v111 = vunpack.c.l.b16 %v66
    %v112 = vunpack.c.l.b16 %v67
    %v113 = vunpack.c.l.b16 %v68
    %v114 = vunpack.c.l.b16 %v69
    %v115 = vunpack.c.l.b16 %v70
    %v116 = vunpack.c.l.b16 %v71
    %v117 = vunpack.c.l.b16 %v72
    %v118 = vunpack.c.l.b16 %v73
    %v119 = vunpack.c.l.b16 %v74
    %v120 = vunpack.c.l.b16 %v75
    %v121 = vunpack.c.l.b16 %v76
    %v122 = vunpack.c.l.b16 %v77
    %v123 = vunpack.c.l.b16 %v78
    %v124 = vunpack.c.l.b16 %v79
    %v125 = vunpack.c.l.b16 %v80
    %v126 = vpack.c.b16 %v111, %v110
    %v127 = vpack.c.b16 %v113, %v112
    %v128 = vpack.c.b16 %v115, %v114
    %v129 = vpack.c.b16 %v117, %v116
    %v130 = vpack.c.b16 %v119, %v118
    %v131 = vpack.c.b16 %v121, %v120
    %v132 = vpack.c.b16 %v123, %v122
    %v133 = vpack.c.b16 %v125, %v124
    %142 = vmatprep.subr.bf16.mxu0 0
    %143 = vmatpush1.bf16.msra.mxu0 %v133
    %144 = vmatprep.subr.bf16.mxu0 0
    %145 = vmatpush1.bf16.msra.mxu0 %v132
    %146 = vmatprep.subr.bf16.mxu0 0
    %147 = vmatpush1.bf16.msra.mxu0 %v131
    %148 = vmatprep.subr.bf16.mxu0 0
    %149 = vmatpush1.bf16.msra.mxu0 %v130
    %150 = vmatprep.subr.bf16.mxu0 0
    %151 = vmatpush1.bf16.msra.mxu0 %v129
    %152 = vmatprep.subr.bf16.mxu0 0
    %153 = vmatpush1.bf16.msra.mxu0 %v128
    %154 = vmatprep.subr.bf16.mxu0 0
    %155 = vmatpush1.bf16.msra.mxu0 %v127
    %156 = vmatprep.subr.bf16.mxu0 0
    %157 = vmatpush1.bf16.msra.mxu0 %v126
    %158 = vmatprep.subr.bf16.mxu0 0
    %159 = vmatpush2.bf16.msra.mxu0 0
    %160 = vmatprep.subr.bf16.mxu0 0
    %161 = vmatpush2.bf16.msra.mxu0 0
    %162 = vmatprep.subr.bf16.mxu0 0
    %163 = vmatpush2.bf16.msra.mxu0 0
    %164 = vmatprep.subr.bf16.mxu0 0
    %165 = vmatpush2.bf16.msra.mxu0 0
    %166 = vmatprep.subr.bf16.mxu0 0
    %167 = vmatpush2.bf16.msra.mxu0 0
    %168 = vmatprep.subr.bf16.mxu0 0
    %169 = vmatpush2.bf16.msra.mxu0 0
    %170 = vmatprep.subr.bf16.mxu0 0
    %171 = vmatpush2.bf16.msra.mxu0 0
    %172 = vmatprep.subr.bf16.mxu0 0
    %173 = vmatpush2.bf16.msra.mxu0 0
    %174 = vmatprep.mubr.bf16.mxu0 0
    %175 = vmatmul.mubr.bf16.gmra.mxu0 %v92
    %v176 = vpop.f32.mrf.mxu0
    %v177 = vadd.f32 %v86, %v176
    %v178 = vpop.f32.mrf.mxu0
    %v179 = vpop.f32.mrf.mxu0
    %v180 = vadd.f32 %v86, %v179
    %v181 = vpop.f32.mrf.mxu0
    %182 = vdwg.mxu0
    %v183 = vmul.f32 %v177, 0.5
    %v184 = vmul.f32 %v180, 0.5
    %v185 = vtanh.pop %v183
    %v186 = vtanh.pop %v184
    %v187 = vadd.f32 %v185, 1.0
    %v188 = vadd.f32 %v186, 1.0
    %v189 = vmul.f32 %v187, 0.5
    %v190 = vmul.f32 %v188, 0.5
    %v191 = vpack.c.bf16 %v190, %v189
    %v192 = vld [vmem:[#allocation7] sm:$0xf]
    %v193 = vld [vmem:[#allocation7 + $0x4] sm:$0xf]
    %v194 = vld [vmem:[#allocation7 + $0x8] sm:$0xf]
    %v195 = vld [vmem:[#allocation7 + $0xc] sm:$0xf]
    %v196 = vld [vmem:[#allocation7 + $0x10] sm:$0xf]
    %v197 = vld [vmem:[#allocation7 + $0x14] sm:$0xf]
    %v198 = vld [vmem:[#allocation7 + $0x18] sm:$0xf]
    %v199 = vld [vmem:[#allocation7 + $0x1c] sm:$0xf]
    %v200 = vld [vmem:[#allocation7 + $0x20] sm:$0xf]
    %v201 = vld [vmem:[#allocation7 + $0x24] sm:$0xf]
    %v202 = vld [vmem:[#allocation7 + $0x28] sm:$0xf]
    %v203 = vld [vmem:[#allocation7 + $0x2c] sm:$0xf]
    %v204 = vld [vmem:[#allocation7 + $0x30] sm:$0xf]
    %v205 = vld [vmem:[#allocation7 + $0x34] sm:$0xf]
    %v206 = vld [vmem:[#allocation7 + $0x38] sm:$0xf]
    %v207 = vld [vmem:[#allocation7 + $0x3c] sm:$0xf]
    %v208 = vld [vmem:[%s4] sm:$0x1]
    %v210 = vlaneseq
    %v211 = vshrl.u32 %v210, 7
    %v212 = vsub.s32 0, %v211
    %v213 = vrot.slane %v208, %v212
    %v231 = vunpack.c.l.b16 %v192
    %v232 = vunpack.c.l.b16 %v193
    %v233 = vunpack.c.l.b16 %v194
    %v234 = vunpack.c.l.b16 %v195
    %v235 = vunpack.c.l.b16 %v196
    %v236 = vunpack.c.l.b16 %v197
    %v237 = vunpack.c.l.b16 %v198
    %v238 = vunpack.c.l.b16 %v199
    %v239 = vunpack.c.l.b16 %v200
    %v240 = vunpack.c.l.b16 %v201
    %v241 = vunpack.c.l.b16 %v202
    %v242 = vunpack.c.l.b16 %v203
    %v243 = vunpack.c.l.b16 %v204
    %v244 = vunpack.c.l.b16 %v205
    %v245 = vunpack.c.l.b16 %v206
    %v246 = vunpack.c.l.b16 %v207
    %v247 = vpack.c.b16 %v232, %v231
    %v248 = vpack.c.b16 %v234, %v233
    %v249 = vpack.c.b16 %v236, %v235
    %v250 = vpack.c.b16 %v238, %v237
    %v251 = vpack.c.b16 %v240, %v239
    %v252 = vpack.c.b16 %v242, %v241
    %v253 = vpack.c.b16 %v244, %v243
    %v254 = vpack.c.b16 %v246, %v245
    %263 = vmatprep.subr.bf16.mxu0 0
    %264 = vmatpush1.bf16.msra.mxu0 %v254
    %265 = vmatprep.subr.bf16.mxu0 0
    %266 = vmatpush1.bf16.msra.mxu0 %v253
    %267 = vmatprep.subr.bf16.mxu0 0
    %268 = vmatpush1.bf16.msra.mxu0 %v252
    %269 = vmatprep.subr.bf16.mxu0 0
    %270 = vmatpush1.bf16.msra.mxu0 %v251
    %271 = vmatprep.subr.bf16.mxu0 0
    %272 = vmatpush1.bf16.msra.mxu0 %v250
    %273 = vmatprep.subr.bf16.mxu0 0
    %274 = vmatpush1.bf16.msra.mxu0 %v249
    %275 = vmatprep.subr.bf16.mxu0 0
    %276 = vmatpush1.bf16.msra.mxu0 %v248
    %277 = vmatprep.subr.bf16.mxu0 0
    %278 = vmatpush1.bf16.msra.mxu0 %v247
    %279 = vmatprep.subr.bf16.mxu0 0
    %280 = vmatpush2.bf16.msra.mxu0 0
    %281 = vmatprep.subr.bf16.mxu0 0
    %282 = vmatpush2.bf16.msra.mxu0 0
    %283 = vmatprep.subr.bf16.mxu0 0
    %284 = vmatpush2.bf16.msra.mxu0 0
    %285 = vmatprep.subr.bf16.mxu0 0
    %286 = vmatpush2.bf16.msra.mxu0 0
    %287 = vmatprep.subr.bf16.mxu0 0
    %288 = vmatpush2.bf16.msra.mxu0 0
    %289 = vmatprep.subr.bf16.mxu0 0
    %290 = vmatpush2.bf16.msra.mxu0 0
    %291 = vmatprep.subr.bf16.mxu0 0
    %292 = vmatpush2.bf16.msra.mxu0 0
    %293 = vmatprep.subr.bf16.mxu0 0
    %294 = vmatpush2.bf16.msra.mxu0 0
    %295 = vmatprep.mubr.bf16.mxu0 0
    %296 = vmatmul.mubr.bf16.gmra.mxu0 %v191
    %v297 = vpop.f32.mrf.mxu0
    %v298 = vadd.f32 %v213, %v297
    %v299 = vpop.f32.mrf.mxu0
    %v300 = vpop.f32.mrf.mxu0
    %v301 = vadd.f32 %v213, %v300
    %v302 = vpop.f32.mrf.mxu0
    %303 = vdwg.mxu0
    %304 = vmax.xlane.f32.xlu0 %v298
    %v305 = vpop.xlane.xlu0 %304
    %306 = vmax.xlane.f32.xlu0 %v301
    %v307 = vpop.xlane.xlu0 %306
    %v308 = vsub.f32 %v298, %v305
    %v309 = vsub.f32 %v301, %v307
    %v310 = vmul.f32 %v308, 1.442695
    %v311 = vpow.pop %v310
    %v312 = vmul.f32 %v309, 1.442695
    %v313 = vpow.pop %v312
    %314 = vadd.xlane.f32.xlu0 %v311
    %v315 = vpop.xlane.xlu0 %314
    %316 = vadd.xlane.f32.xlu0 %v313
    %v317 = vpop.xlane.xlu0 %316
    %v318 = vrcp.pop %v315
    %v319 = vmul.f32 1.0, %v318
    %v320 = vrcp.pop %v317
    %v321 = vmul.f32 1.0, %v320
    %v322 = vmul.f32 %v311, %v319
    %v323 = vmul.f32 %v313, %v321
    %324 = vst [vmem:[#allocation8] sm:$0xff] %v322
    %325 = vst [vmem:[#allocation8 + $0x8] sm:$0xff] %v323
    // Predicated region
    $region34: #{tpu_custom_call.1} parent=1 // pred_check
      _
    $region35: #{tpu_custom_call.1} parent=1 // pred_check_branch
      %327 = sbr.rel (0) target = $region37
    $region36: #{tpu_custom_call.1} parent=1 // pred_region
      %s329 = ssub.s32 256, 256
      %330 = vsyncadd [#allocation4], %s329
      %s331 = sshll.u32 [#allocation8], 4
      %s332 = int_to_ptr.vmem [resolvable:$true] %s331
      %337 = dma.vmem_to_hbm [thread:$0]  %s332, 256, %s5, [#allocation4], 128, 128, 8
    $region37: #{tpu_custom_call.1} parent=1 // pred_fallthru
      _
    // Predicated region
    $region38: #{tpu_custom_call.1} parent=1 // pred_check
      _
    $region39: #{tpu_custom_call.1} parent=1 // pred_check_branch
      %339 = sbr.rel (0) target = $region41
    $region40: #{tpu_custom_call.1} parent=1 // pred_region
      %340 = dma.done [#allocation4], 256
    $region41: #{tpu_custom_call.1} parent=1 // pred_fallthru
      _
    %341 = vsyncpa [#allocation3], 1
    %342 = vsyncpa [#allocation6], 1
    %343 = vsyncpa [#allocation4], 1

// kernel: tpu_custom_call.1
$region0: #{tpu_custom_call.1}
  #allocation0 [shape = 'u32[]', space=smem, size = 0x4, offset = 0x4, fixed_abs, tag = 'smem constant byte address 0x4 - core index']
  #allocation1 [shape = 'u32[144,128]{1,0:T(1,128)}', space=vmem, size = 0x12000, scoped, tag = 'internal scratch']
  %s0 = inlined_call_operand.hbm [shape: bf16[16,128], index: 0, kind: input, shape index: {}]
  %s1 = inlined_call_operand.hbm [shape: bf16[128,128], index: 1, kind: input, shape index: {}]
  %s2 = inlined_call_operand.vmem [shape: f32[1,128], index: 2, kind: input, shape index: {}]
  %s3 = inlined_call_operand.hbm [shape: bf16[128,128], index: 3, kind: input, shape index: {}]
  %s4 = inlined_call_operand.vmem [shape: f32[1,128], index: 4, kind: input, shape index: {}]
  %s5 = inlined_call_operand.hbm [shape: f32[16,128], index: 5, kind: output, shape index: {}]
  %s6 = sld [smem:[#allocation0]]
  $region42: #{tpu_custom_call.1} parent=0
    _
  %s8 = ssub.s32 1, %s6
  %s9 = scalar_select 0, %s8, %s6
  $region1: #{tpu_custom_call.1} parent=0
    #allocation2 [shape = 'u8[4096]{0}', space=vmem, size = 0x1000, scoped, tag = 'input window, operand 0, single buffered']
    #allocation3 [shape = 's32[1]{0}', space=sflag, size = 0x4, scoped, tag = 'scoped memory for tpu_custom_call.1']
    #allocation4 [shape = 's32[1]{0}', space=sflag, size = 0x4, scoped, tag = 'scoped memory for tpu_custom_call.1']
    #allocation5 [shape = 'u8[32768]{0}', space=vmem, size = 0x8000, scoped, tag = 'input window, operand 1, single buffered']
    #allocation6 [shape = 's32[1]{0}', space=sflag, size = 0x4, scoped, tag = 'scoped memory for tpu_custom_call.1']
    #allocation7 [shape = 'u8[32768]{0}', space=vmem, size = 0x8000, scoped, tag = 'input window, operand 3, single buffered']
    #allocation8 [shape = 'u8[8192]{0}', space=vmem, size = 0x2000, scoped, tag = 'output window, operand 0, single buffered']
    %10 = vsyncpa [#allocation3], 0
    %11 = vsyncpa [#allocation6], 0
    %12 = vsyncpa [#allocation4], 0
    // Predicated region
    $region2: #{tpu_custom_call.1} parent=1 // pred_check
      _
    $region3: #{tpu_custom_call.1} parent=1 // pred_check_branch
      %14 = sbr.rel (0) target = $region5
    $region4: #{tpu_custom_call.1} parent=1 // pred_region
      %s16 = ssub.s32 128, 128
      %17 = vsyncadd [#allocation3], %s16
      %s18 = sshll.u32 [#allocation2], 4
      %s19 = int_to_ptr.vmem [resolvable:$true] %s18
      %24 = dma.hbm_to_vmem [thread:$0]  %s0, 128, %s19, [#allocation3], 64, 64, 4
    $region5: #{tpu_custom_call.1} parent=1 // pred_fallthru
      _
    // Predicated region
    $region6: #{tpu_custom_call.1} parent=1 // pred_check
      _
    $region7: #{tpu_custom_call.1} parent=1 // pred_check_branch
      %26 = sbr.rel (0) target = $region9
    $region8: #{tpu_custom_call.1} parent=1 // pred_region
      %s28 = ssub.s32 1024, 1024
      %29 = vsyncadd [#allocation6], %s28
      %s30 = sshll.u32 [#allocation5], 4
      %s31 = int_to_ptr.vmem [resolvable:$true] %s30
      %36 = dma.hbm_to_vmem [thread:$0]  %s1, 1024, %s31, [#allocation6], 64, 64, 4
    $region9: #{tpu_custom_call.1} parent=1 // pred_fallthru
      _
    // Predicated region
    $region10: #{tpu_custom_call.1} parent=1 // pred_check
      _
    $region11: #{tpu_custom_call.1} parent=1 // pred_check_branch
      %38 = sbr.rel (0) target = $region13
    $region12: #{tpu_custom_call.1} parent=1 // pred_region
      _
    $region13: #{tpu_custom_call.1} parent=1 // pred_fallthru
      _
    // Predicated region
    $region14: #{tpu_custom_call.1} parent=1 // pred_check
      _
    $region15: #{tpu_custom_call.1} parent=1 // pred_check_branch
      %40 = sbr.rel (0) target = $region17
    $region16: #{tpu_custom_call.1} parent=1 // pred_region
      %s42 = ssub.s32 1024, 1024
      %43 = vsyncadd [#allocation6], %s42
      %s44 = sshll.u32 [#allocation7], 4
      %s45 = int_to_ptr.vmem [resolvable:$true] %s44
      %50 = dma.hbm_to_vmem [thread:$0]  %s3, 1024, %s45, [#allocation6], 64, 64, 4
    $region17: #{tpu_custom_call.1} parent=1 // pred_fallthru
      _
    // Predicated region
    $region18: #{tpu_custom_call.1} parent=1 // pred_check
      _
    $region19: #{tpu_custom_call.1} parent=1 // pred_check_branch
      %52 = sbr.rel (0) target = $region21
    $region20: #{tpu_custom_call.1} parent=1 // pred_region
      _
    $region21: #{tpu_custom_call.1} parent=1 // pred_fallthru
      _
    // Predicated region
    $region22: #{tpu_custom_call.1} parent=1 // pred_check
      _
    $region23: #{tpu_custom_call.1} parent=1 // pred_check_branch
      %54 = sbr.rel (0) target = $region25
    $region24: #{tpu_custom_call.1} parent=1 // pred_region
      %55 = dma.done [#allocation3], 128
    $region25: #{tpu_custom_call.1} parent=1 // pred_fallthru
      _
    // Predicated region
    $region26: #{tpu_custom_call.1} parent=1 // pred_check
      _
    $region27: #{tpu_custom_call.1} parent=1 // pred_check_branch
      %57 = sbr.rel (0) target = $region29
    $region28: #{tpu_custom_call.1} parent=1 // pred_region
      %58 = dma.done [#allocation6], 1024
    $region29: #{tpu_custom_call.1} parent=1 // pred_fallthru
      _
    // Predicated region
    $region30: #{tpu_custom_call.1} parent=1 // pred_check
      _
    $region31: #{tpu_custom_call.1} parent=1 // pred_check_branch
      %60 = sbr.rel (0) target = $region33
    $region32: #{tpu_custom_call.1} parent=1 // pred_region
      %61 = dma.done [#allocation6], 1024
    $region33: #{tpu_custom_call.1} parent=1 // pred_fallthru
      _
    %v63 = vld [vmem:[#allocation2] sm:$0xf]
    %v64 = vld [vmem:[#allocation2 + $0x4] sm:$0xf]
    %v65 = vld [vmem:[#allocation5] sm:$0xf]
    %v66 = vld [vmem:[#allocation5 + $0x4] sm:$0xf]
    %v67 = vld [vmem:[#allocation5 + $0x8] sm:$0xf]
    %v68 = vld [vmem:[#allocation5 + $0xc] sm:$0xf]
    %v69 = vld [vmem:[#allocation5 + $0x10] sm:$0xf]
    %v70 = vld [vmem:[#allocation5 + $0x14] sm:$0xf]
    %v71 = vld [vmem:[#allocation5 + $0x18] sm:$0xf]
    %v72 = vld [vmem:[#allocation5 + $0x1c] sm:$0xf]
    %v73 = vld [vmem:[#allocation5 + $0x20] sm:$0xf]
    %v74 = vld [vmem:[#allocation5 + $0x24] sm:$0xf]
    %v75 = vld [vmem:[#allocation5 + $0x28] sm:$0xf]
    %v76 = vld [vmem:[#allocation5 + $0x2c] sm:$0xf]
    %v77 = vld [vmem:[#allocation5 + $0x30] sm:$0xf]
    %v78 = vld [vmem:[#allocation5 + $0x34] sm:$0xf]
    %v79 = vld [vmem:[#allocation5 + $0x38] sm:$0xf]
    %v80 = vld [vmem:[#allocation5 + $0x3c] sm:$0xf]
    %v81 = vld [vmem:[%s2] sm:$0x1]
    %v83 = vlaneseq
    %v84 = vshrl.u32 %v83, 7
    %v85 = vsub.s32 0, %v84
    %v86 = vrot.slane %v81, %v85
    %v90 = vunpack.c.l.b16 %v63
    %v91 = vunpack.c.l.b16 %v64
    %v92 = vpack.c.b16 %v91, %v90
    %v110 = vunpack.c.l.b16 %v65
    %v111 = vunpack.c.l.b16 %v66
    %v112 = vunpack.c.l.b16 %v67
    %v113 = vunpack.c.l.b16 %v68
    %v114 = vunpack.c.l.b16 %v69
    %v115 = vunpack.c.l.b16 %v70
    %v116 = vunpack.c.l.b16 %v71
    %v117 = vunpack.c.l.b16 %v72
    %v118 = vunpack.c.l.b16 %v73
    %v119 = vunpack.c.l.b16 %v74
    %v120 = vunpack.c.l.b16 %v75
    %v121 = vunpack.c.l.b16 %v76
    %v122 = vunpack.c.l.b16 %v77
    %v123 = vunpack.c.l.b16 %v78
    %v124 = vunpack.c.l.b16 %v79
    %v125 = vunpack.c.l.b16 %v80
    %v126 = vpack.c.b16 %v111, %v110
    %v127 = vpack.c.b16 %v113, %v112
    %v128 = vpack.c.b16 %v115, %v114
    %v129 = vpack.c.b16 %v117, %v116
    %v130 = vpack.c.b16 %v119, %v118
    %v131 = vpack.c.b16 %v121, %v120
    %v132 = vpack.c.b16 %v123, %v122
    %v133 = vpack.c.b16 %v125, %v124
    %142 = vmatprep.subr.bf16.mxu0 0
    %143 = vmatpush1.bf16.msra.mxu0 %v133
    %144 = vmatprep.subr.bf16.mxu0 0
    %145 = vmatpush1.bf16.msra.mxu0 %v132
    %146 = vmatprep.subr.bf16.mxu0 0
    %147 = vmatpush1.bf16.msra.mxu0 %v131
    %148 = vmatprep.subr.bf16.mxu0 0
    %149 = vmatpush1.bf16.msra.mxu0 %v130
    %150 = vmatprep.subr.bf16.mxu0 0
    %151 = vmatpush1.bf16.msra.mxu0 %v129
    %152 = vmatprep.subr.bf16.mxu0 0
    %153 = vmatpush1.bf16.msra.mxu0 %v128
    %154 = vmatprep.subr.bf16.mxu0 0
    %155 = vmatpush1.bf16.msra.mxu0 %v127
    %156 = vmatprep.subr.bf16.mxu0 0
    %157 = vmatpush1.bf16.msra.mxu0 %v126
    %158 = vmatprep.subr.bf16.mxu0 0
    %159 = vmatpush2.bf16.msra.mxu0 0
    %160 = vmatprep.subr.bf16.mxu0 0
    %161 = vmatpush2.bf16.msra.mxu0 0
    %162 = vmatprep.subr.bf16.mxu0 0
    %163 = vmatpush2.bf16.msra.mxu0 0
    %164 = vmatprep.subr.bf16.mxu0 0
    %165 = vmatpush2.bf16.msra.mxu0 0
    %166 = vmatprep.subr.bf16.mxu0 0
    %167 = vmatpush2.bf16.msra.mxu0 0
    %168 = vmatprep.subr.bf16.mxu0 0
    %169 = vmatpush2.bf16.msra.mxu0 0
    %170 = vmatprep.subr.bf16.mxu0 0
    %171 = vmatpush2.bf16.msra.mxu0 0
    %172 = vmatprep.subr.bf16.mxu0 0
    %173 = vmatpush2.bf16.msra.mxu0 0
    %174 = vmatprep.mubr.bf16.mxu0 0
    %175 = vmatmul.mubr.bf16.gmra.mxu0 %v92
    %v176 = vpop.f32.mrf.mxu0
    %v177 = vadd.f32 %v86, %v176
    %v178 = vpop.f32.mrf.mxu0
    %v179 = vpop.f32.mrf.mxu0
    %v180 = vadd.f32 %v86, %v179
    %v181 = vpop.f32.mrf.mxu0
    %182 = vdwg.mxu0
    %v183 = vmul.f32 %v177, 0.5
    %v184 = vmul.f32 %v180, 0.5
    %v185 = vtanh.pop %v183
    %v186 = vtanh.pop %v184
    %v187 = vadd.f32 %v185, 1.0
    %v188 = vadd.f32 %v186, 1.0
    %v189 = vmul.f32 %v187, 0.5
    %v190 = vmul.f32 %v188, 0.5
    %v191 = vpack.c.bf16 %v190, %v189
    %v192 = vld [vmem:[#allocation7] sm:$0xf]
    %v193 = vld [vmem:[#allocation7 + $0x4] sm:$0xf]
    %v194 = vld [vmem:[#allocation7 + $0x8] sm:$0xf]
    %v195 = vld [vmem:[#allocation7 + $0xc] sm:$0xf]
    %v196 = vld [vmem:[#allocation7 + $0x10] sm:$0xf]
    %v197 = vld [vmem:[#allocation7 + $0x14] sm:$0xf]
    %v198 = vld [vmem:[#allocation7 + $0x18] sm:$0xf]
    %v199 = vld [vmem:[#allocation7 + $0x1c] sm:$0xf]
    %v200 = vld [vmem:[#allocation7 + $0x20] sm:$0xf]
    %v201 = vld [vmem:[#allocation7 + $0x24] sm:$0xf]
    %v202 = vld [vmem:[#allocation7 + $0x28] sm:$0xf]
    %v203 = vld [vmem:[#allocation7 + $0x2c] sm:$0xf]
    %v204 = vld [vmem:[#allocation7 + $0x30] sm:$0xf]
    %v205 = vld [vmem:[#allocation7 + $0x34] sm:$0xf]
    %v206 = vld [vmem:[#allocation7 + $0x38] sm:$0xf]
    %v207 = vld [vmem:[#allocation7 + $0x3c] sm:$0xf]
    %v208 = vld [vmem:[%s4] sm:$0x1]
    %v210 = vlaneseq
    %v211 = vshrl.u32 %v210, 7
    %v212 = vsub.s32 0, %v211
    %v213 = vrot.slane %v208, %v212
    %v231 = vunpack.c.l.b16 %v192
    %v232 = vunpack.c.l.b16 %v193
    %v233 = vunpack.c.l.b16 %v194
    %v234 = vunpack.c.l.b16 %v195
    %v235 = vunpack.c.l.b16 %v196
    %v236 = vunpack.c.l.b16 %v197
    %v237 = vunpack.c.l.b16 %v198
    %v238 = vunpack.c.l.b16 %v199
    %v239 = vunpack.c.l.b16 %v200
    %v240 = vunpack.c.l.b16 %v201
    %v241 = vunpack.c.l.b16 %v202
    %v242 = vunpack.c.l.b16 %v203
    %v243 = vunpack.c.l.b16 %v204
    %v244 = vunpack.c.l.b16 %v205
    %v245 = vunpack.c.l.b16 %v206
    %v246 = vunpack.c.l.b16 %v207
    %v247 = vpack.c.b16 %v232, %v231
    %v248 = vpack.c.b16 %v234, %v233
    %v249 = vpack.c.b16 %v236, %v235
    %v250 = vpack.c.b16 %v238, %v237
    %v251 = vpack.c.b16 %v240, %v239
    %v252 = vpack.c.b16 %v242, %v241
    %v253 = vpack.c.b16 %v244, %v243
    %v254 = vpack.c.b16 %v246, %v245
    %263 = vmatprep.subr.bf16.mxu0 0
    %264 = vmatpush1.bf16.msra.mxu0 %v254
    %265 = vmatprep.subr.bf16.mxu0 0
    %266 = vmatpush1.bf16.msra.mxu0 %v253
    %267 = vmatprep.subr.bf16.mxu0 0
    %268 = vmatpush1.bf16.msra.mxu0 %v252
    %269 = vmatprep.subr.bf16.mxu0 0
    %270 = vmatpush1.bf16.msra.mxu0 %v251
    %271 = vmatprep.subr.bf16.mxu0 0
    %272 = vmatpush1.bf16.msra.mxu0 %v250
    %273 = vmatprep.subr.bf16.mxu0 0
    %274 = vmatpush1.bf16.msra.mxu0 %v249
    %275 = vmatprep.subr.bf16.mxu0 0
    %276 = vmatpush1.bf16.msra.mxu0 %v248
    %277 = vmatprep.subr.bf16.mxu0 0
    %278 = vmatpush1.bf16.msra.mxu0 %v247
    %279 = vmatprep.subr.bf16.mxu0 0
    %280 = vmatpush2.bf16.msra.mxu0 0
    %281 = vmatprep.subr.bf16.mxu0 0
    %282 = vmatpush2.bf16.msra.mxu0 0
    %283 = vmatprep.subr.bf16.mxu0 0
    %284 = vmatpush2.bf16.msra.mxu0 0
    %285 = vmatprep.subr.bf16.mxu0 0
    %286 = vmatpush2.bf16.msra.mxu0 0
    %287 = vmatprep.subr.bf16.mxu0 0
    %288 = vmatpush2.bf16.msra.mxu0 0
    %289 = vmatprep.subr.bf16.mxu0 0
    %290 = vmatpush2.bf16.msra.mxu0 0
    %291 = vmatprep.subr.bf16.mxu0 0
    %292 = vmatpush2.bf16.msra.mxu0 0
    %293 = vmatprep.subr.bf16.mxu0 0
    %294 = vmatpush2.bf16.msra.mxu0 0
    %295 = vmatprep.mubr.bf16.mxu0 0
    %296 = vmatmul.mubr.bf16.gmra.mxu0 %v191
    %v297 = vpop.f32.mrf.mxu0
    %v298 = vadd.f32 %v213, %v297
    %v299 = vpop.f32.mrf.mxu0
    %v300 = vpop.f32.mrf.mxu0
    %v301 = vadd.f32 %v213, %v300
    %v302 = vpop.f32.mrf.mxu0
    %303 = vdwg.mxu0
    %304 = vmax.xlane.f32.xlu0 %v298
    %v305 = vpop.xlane.xlu0 %304
    %306 = vmax.xlane.f32.xlu0 %v301
    %v307 = vpop.xlane.xlu0 %306
    %v308 = vsub.f32 %v298, %v305
    %v309 = vsub.f32 %v301, %v307
    %v310 = vmul.f32 %v308, 1.442695
    %v311 = vpow.pop %v310
    %v312 = vmul.f32 %v309, 1.442695
    %v313 = vpow.pop %v312
    %314 = vadd.xlane.f32.xlu0 %v311
    %v315 = vpop.xlane.xlu0 %314
    %316 = vadd.xlane.f32.xlu0 %v313
    %v317 = vpop.xlane.xlu0 %316
    %v318 = vrcp.pop %v315
    %v319 = vmul.f32 1.0, %v318
    %v320 = vrcp.pop %v317
    %v321 = vmul.f32 1.0, %v320
    %v322 = vmul.f32 %v311, %v319
    %v323 = vmul.f32 %v313, %v321
    %324 = vst [vmem:[#allocation8] sm:$0xff] %v322
    %325 = vst [vmem:[#allocation8 + $0x8] sm:$0xff] %v323
    // Predicated region
    $region34: #{tpu_custom_call.1} parent=1 // pred_check
      _
    $region35: #{tpu_custom_call.1} parent=1 // pred_check_branch
      %327 = sbr.rel (0) target = $region37
    $region36: #{tpu_custom_call.1} parent=1 // pred_region
      %s329 = ssub.s32 256, 256
      %330 = vsyncadd [#allocation4], %s329
      %s331 = sshll.u32 [#allocation8], 4
      %s332 = int_to_ptr.vmem [resolvable:$true] %s331
      %337 = dma.vmem_to_hbm [thread:$0]  %s332, 256, %s5, [#allocation4], 128, 128, 8
    $region37: #{tpu_custom_call.1} parent=1 // pred_fallthru
      _
    // Predicated region
    $region38: #{tpu_custom_call.1} parent=1 // pred_check
      _
    $region39: #{tpu_custom_call.1} parent=1 // pred_check_branch
      %339 = sbr.rel (0) target = $region41
    $region40: #{tpu_custom_call.1} parent=1 // pred_region
      %340 = dma.done [#allocation4], 256
    $region41: #{tpu_custom_call.1} parent=1 // pred_fallthru
      _
    %341 = vsyncpa [#allocation3], 1
    %342 = vsyncpa [#allocation6], 1
    %343 = vsyncpa [#allocation4], 1

</llo_original>
